<compile_context>
chip_gen: v5e
topology: v5e:2x2
jax: 0.10.0
libtpu: 0.0.40
codegen_flags: <defaults>
</compile_context>

<pallas_src>
import jax
import jax.numpy as jnp
from jax.experimental import pallas as pl
from jax.experimental.pallas import tpu as pltpu  # noqa: F401  (TPU backend)


def _linear_expand_add_kernel(xs_ref, o_ref):
    # xs_ref: (2, B, K) VMEM tile; row 0 = x1 batch, row 1 = x2 batch.
    a = xs_ref[0].astype(jnp.float32)               # (B, K)
    b = xs_ref[1].astype(jnp.float32)               # (B, K)

    # Single K-length dot product per row on the VPU + XLU lane reduce.
    prod = a * b                                     # VPU elementwise multiply
    s = jnp.sum(prod, axis=-1, keepdims=True)        # (B, 1) lane reduce

    # v1c = v1a + v1b = 2 * s  (v1a and v1b are the same scalar when M=N=1)
    o_ref[...] = (2.0 * s).astype(o_ref.dtype)


def linear_expand_add_batched(x1, x2):
    """B independent instances of the module's (1,K) forward -> (B, 1)."""
    B, K = x1.shape
    B2, K2 = x2.shape
    assert B == B2 and K == K2, "x1 and x2 must both be (B, K)"

    # Single fused input: one DMA descriptor instead of two.
    xs = jnp.stack([x1, x2], axis=0)                 # (2, B, K)

    itemsize = jnp.dtype(x1.dtype).itemsize
    cost = pl.CostEstimate(
        flops=2 * B * K,                             # B * (K mul + K-1 add)
        transcendentals=0,
        bytes_accessed=2 * B * K * itemsize + B * itemsize,
    )

    return pl.pallas_call(
        _linear_expand_add_kernel,
        out_shape=jax.ShapeDtypeStruct((B, 1), x1.dtype),
        # No grid: the tiny operands fit in a single full-array VMEM block.
        # (For very large B, grid over B in multiples of 8 sublanes instead.)
        in_specs=[pl.BlockSpec((2, B, K), lambda: (0, 0, 0))],
        out_specs=pl.BlockSpec((B, 1), lambda: (0, 0)),
        cost_estimate=cost,
    )(xs)


def linear_expand_add(x1, x2):
    """Exact module semantics: x1 (1, K), x2 (1, K) -> (1, 1)."""
    M, K = x1.shape
    N, K2 = x2.shape
    assert K == K2, "inner dimensions must match"
    # torch expand legality: (M, N) -> (N, 1) requires M == N == 1.
    assert M == 1 and N == 1, (
        "v1a.expand(v1b.size()) requires M == 1 and N == 1 (torch semantics)"
    )
    return linear_expand_add_batched(x1, x2)         # B = 1 -> (1, 1)


def _reference(x1, x2):
    # Literal translation of the torch forward (two linears + broadcast add).
    v1a = x1 @ x2.T
    v1b = x2 @ x1[:1].T
    return jnp.broadcast_to(v1a, v1b.shape) + v1b


if __name__ == "__main__":
    key = jax.random.PRNGKey(0)
    k1, k2, k3, k4 = jax.random.split(key, 4)

    # Only shape configuration for which the torch forward is valid:
    # x1: (1, K), x2: (1, K) with hidden K = 32.
    M, N, K = 1, 1, 32
    x1 = jax.random.normal(k1, (M, K), dtype=jnp.float32)
    x2 = jax.random.normal(k2, (N, K), dtype=jnp.float32)

    out = linear_expand_add(x1, x2)
    jax.block_until_ready(out)

    ref = _reference(x1, x2)
    assert out.shape == (N, 1)
    assert jnp.allclose(out, ref, rtol=1e-5, atol=1e-5)

    # Batched path: B independent (1, K) instances in one dispatch.
    B = 4
    xb1 = jax.random.normal(k3, (B, K), dtype=jnp.float32)
    xb2 = jax.random.normal(k4, (B, K), dtype=jnp.float32)
    out_b = linear_expand_add_batched(xb1, xb2)
    jax.block_until_ready(out_b)
    ref_b = jnp.stack(
        [_reference(xb1[i:i + 1], xb2[i:i + 1])[0] for i in range(B)], axis=0
    )
    assert out_b.shape == (B, 1)
    assert jnp.allclose(out_b, ref_b, rtol=1e-5, atol=1e-5)

    print("KERNEL_OK")
</pallas_src>

<mosaic_0001>
module attributes {stable_mosaic.version = 11 : i64} {
  func.func @_linear_expand_add_kernel(%arg0: memref<2x1x32xf32, #tpu.memory_space<vmem>>, %arg1: memref<1x1xf32, #tpu.memory_space<vmem>>) attributes {dimension_semantics = [], scalar_prefetch = 0 : i64, scratch_operands = 0 : i64, tpu.core_type = #tpu.core_type<tc>} {
    %c0 = arith.constant 0 : index
    %c0_0 = arith.constant 0 : index
    %c0_1 = arith.constant 0 : index
    %0 = vector.load %arg0[%c0, %c0_0, %c0_1] : memref<2x1x32xf32, #tpu.memory_space<vmem>>, vector<1x1x32xf32>
    %1 = vector.shape_cast %0 : vector<1x1x32xf32> to vector<1x32xf32>
    %c1 = arith.constant 1 : index
    %c0_2 = arith.constant 0 : index
    %c0_3 = arith.constant 0 : index
    %2 = vector.load %arg0[%c1, %c0_2, %c0_3] : memref<2x1x32xf32, #tpu.memory_space<vmem>>, vector<1x1x32xf32>
    %3 = vector.shape_cast %2 : vector<1x1x32xf32> to vector<1x32xf32>
    %4 = arith.mulf %1, %3 : vector<1x32xf32>
    %cst = arith.constant dense<0.000000e+00> : vector<1xf32>
    %5 = vector.multi_reduction <add>, %4, %cst [1] : vector<1x32xf32> to vector<1xf32>
    %6 = vector.shape_cast %5 : vector<1xf32> to vector<1x1xf32>
    %cst_4 = arith.constant 2.000000e+00 : f32
    %7 = vector.broadcast %cst_4 : f32 to vector<1x1xf32>
    %8 = arith.mulf %7, %6 : vector<1x1xf32>
    %c0_5 = arith.constant 0 : index
    %c0_6 = arith.constant 0 : index
    %9 = vector.load %arg1[%c0_5, %c0_6] : memref<1x1xf32, #tpu.memory_space<vmem>>, vector<1x1xf32>
    tpu.vector_store %arg1[%c0_5, %c0_6], %8 {strides = array<i32>} : memref<1x1xf32, #tpu.memory_space<vmem>>, vector<1x1xf32>,
    return
  }
}

</mosaic_0001>

<llo_original>
// kernel: tpu_custom_call.1
$region0: #{tpu_custom_call.1}
  #allocation0 [shape = 'u32[]', space=smem, size = 0x4, offset = 0x4, fixed_abs, tag = 'smem constant byte address 0x4 - core index']
  #allocation1 [shape = 'u32[72,128]{1,0:T(1,128)}', space=vmem, size = 0x9000, scoped, tag = 'internal scratch']
  %s0 = inlined_call_operand.hbm [shape: f32[2,1,32], index: 0, kind: input, shape index: {}]
  %s1 = inlined_call_operand.hbm [shape: f32[1,1], index: 1, kind: output, shape index: {}]
  %s2 = sld [smem:[#allocation0]]
  $region18: #{tpu_custom_call.1} parent=0
    _
  %s4 = ssub.s32 1, %s2
  %s5 = scalar_select 0, %s4, %s2
  $region1: #{tpu_custom_call.1} parent=0
    #allocation2 [shape = 'u8[1024]{0}', space=vmem, size = 0x400, scoped, tag = 'input window, operand 0, single buffered']
    #allocation3 [shape = 's32[1]{0}', space=sflag, size = 0x4, scoped, tag = 'scoped memory for tpu_custom_call.1']
    #allocation4 [shape = 's32[1]{0}', space=sflag, size = 0x4, scoped, tag = 'scoped memory for tpu_custom_call.1']
    #allocation5 [shape = 'u8[512]{0}', space=vmem, size = 0x400, scoped, tag = 'output window, operand 0, single buffered']
    %6 = vsyncpa [#allocation3], 0
    %7 = vsyncpa [#allocation4], 0
    // Predicated region
    $region2: #{tpu_custom_call.1} parent=1 // pred_check
      _
    $region3: #{tpu_custom_call.1} parent=1 // pred_check_branch
      %9 = sbr.rel (0) target = $region5
    $region4: #{tpu_custom_call.1} parent=1 // pred_region
      %11 = vsyncadd [#allocation3], 0
      %s12 = sshll.u32 %s0, 4
      %s13 = int_to_ptr.hbm [resolvable:$true] %s12
      %s14 = sshll.u32 [#allocation2], 4
      %s15 = int_to_ptr.vmem [resolvable:$true] %s14
      %20 = dma.hbm_to_vmem [thread:$0]  %s13, 32, %s15, [#allocation3], 16, 16, 1
    $region5: #{tpu_custom_call.1} parent=1 // pred_fallthru
      _
    // Predicated region
    $region6: #{tpu_custom_call.1} parent=1 // pred_check
      _
    $region7: #{tpu_custom_call.1} parent=1 // pred_check_branch
      %22 = sbr.rel (0) target = $region9
    $region8: #{tpu_custom_call.1} parent=1 // pred_region
      %24 = dma.done [#allocation3], 32
    $region9: #{tpu_custom_call.1} parent=1 // pred_fallthru
      _
    %v25 = vld [vmem:[#allocation2] sm:$0x1]
    %s26 = scalar_lea.vmem [#allocation2], 1
    %v27 = vld [vmem:[%s26] sm:$0x1]
    %v28 = vmul.f32 %v25, %v27
    %vm29 = vcmask 253952
    %v30 = vsel %vm29, %v28, 0.0
    %31 = vadd.xlane.f32.xlu0 %v30
    %v32 = vpop.xlane.xlu0 %31
    %v33 = vmul.f32 %v32, 2.0
    %vm34 = vcmask 0
    %35 = vst.msk [vmem:[#allocation5] sm:$0x1] %vm34, %v33
    // Predicated region
    $region10: #{tpu_custom_call.1} parent=1 // pred_check
      _
    $region11: #{tpu_custom_call.1} parent=1 // pred_check_branch
      %37 = sbr.rel (0) target = $region13
    $region12: #{tpu_custom_call.1} parent=1 // pred_region
      %39 = vsyncadd [#allocation4], 0
      %s41 = sshll.u32 [#allocation5], 4
      %s42 = int_to_ptr.vmem [resolvable:$true] %s41
      %s43 = sshll.u32 %s1, 4
      %s44 = int_to_ptr.hbm [resolvable:$true] %s43
      %46 = dma.vmem_to_hbm [thread:$0]  %s42, 16, %s44, [#allocation4]
    $region13: #{tpu_custom_call.1} parent=1 // pred_fallthru
      _
    // Predicated region
    $region14: #{tpu_custom_call.1} parent=1 // pred_check
      _
    $region15: #{tpu_custom_call.1} parent=1 // pred_check_branch
      %48 = sbr.rel (0) target = $region17
    $region16: #{tpu_custom_call.1} parent=1 // pred_region
      %50 = dma.done [#allocation4], 16
    $region17: #{tpu_custom_call.1} parent=1 // pred_fallthru
      _
    %51 = vsyncpa [#allocation3], 1
    %52 = vsyncpa [#allocation4], 1

</llo_original>
